<compile_context>
chip_gen: v6e
topology: v6e:2x2x1
jax: 0.10.0
libtpu: 0.0.40
codegen_flags: <defaults>
</compile_context>

<pallas_src>
import functools
import math

import jax
import jax.numpy as jnp
from jax.experimental import pallas as pl
from jax.experimental.pallas import tpu as pltpu

_LANE = 128      # last-dim tiling (vreg lanes)
_SUBLANE = 8     # second-to-last-dim tiling (vreg sublanes)


def _round_up(n, m):
    return ((n + m - 1) // m) * m


def _apply_act(y, name):
    if name is None:
        return y
    if name == "tanh":
        return jnp.tanh(y)            # EUP; may become the binding slot w/ bf16 MXU
    if name == "relu":
        return jnp.maximum(y, 0.0)    # VPU-only
    if name == "sin":
        return jnp.sin(30.0 * y)
    if name == "swish":
        return y * jax.nn.sigmoid(y)
    raise ValueError(f"{name} is not supported")


# ----------------------------------------------------------------------------
# Fused MLP kernel: all Linear(+act) stages in one body, per batch tile.
# refs = (x_ref, w0_ref, b0_ref, w1_ref, b1_ref, ..., o_ref)
# ----------------------------------------------------------------------------
def _fused_mlp_kernel(*refs, activations, compute_dtype):
    x_ref = refs[0]
    o_ref = refs[-1]
    wb_refs = refs[1:-1]

    h = x_ref[...]
    for j, act in enumerate(activations):
        w = wb_refs[2 * j][...]
        b = wb_refs[2 * j + 1][...]          # f32 bias, (1, fout_p)
        # MXU matmul (f32 or bf16 inputs) with f32 accumulation; bias and
        # activation are applied to the f32 accumulator.
        y = jnp.dot(h.astype(compute_dtype), w,
                    preferred_element_type=jnp.float32) + b
        h = _apply_act(y, act)
    o_ref[...] = h.astype(o_ref.dtype)


def _pick_batch_tile(B, block_b):
    """MXU-friendly batch tile: always a multiple of 8, 256-aligned for big
    tiles, and >=2 grid steps for large batches (both TCs on v7x)."""
    block_b = max(_SUBLANE, _round_up(block_b, _SUBLANE))
    b8 = _round_up(B, _SUBLANE)
    tb = min(block_b, b8)
    # If one tile would cover a large batch entirely, split into two parallel
    # grid steps so dimension_semantics=("parallel",) shards across both
    # TensorCores on v7x.
    if tb == b8 and b8 >= 256:
        tb = _round_up(pl.cdiv(b8, 2), _SUBLANE)
    # For big tiles, round down to a multiple of 256 (fills the 256-wide MXU
    # on v6e/v7x; also a multiple of 128 for v5e's 128-wide MXU).
    if tb >= 512:
        tb = (tb // 256) * 256
    return tb


@functools.partial(jax.jit, static_argnames=("activations", "out_dim", "block_b"))
def _fused_mlp_call(x, packed_flat, *, activations, out_dim, block_b):
    B, in_dim = x.shape
    fin0 = packed_flat[0].shape[0]        # padded input width of layer 0 (x8)
    out_pad = packed_flat[-2].shape[1]    # padded output width of last layer (x128)
    compute_dtype = packed_flat[0].dtype  # f32 or bf16 matmul inputs

    tb = _pick_batch_tile(B, block_b)
    b_pad = _round_up(B, tb)

    # Only materialize a padded copy of x when actually required (avoids an
    # extra HBM read+write pass over the input in the common aligned case).
    if (b_pad != B) or (in_dim != fin0):
        x_in = jnp.zeros((b_pad, fin0), x.dtype).at[:B, :in_dim].set(x)
    else:
        x_in = x

    # x / out are tiled along the batch grid axis; weights & biases use a
    # constant index_map so they stay resident in VMEM across all grid steps.
    in_specs = [pl.BlockSpec((tb, fin0), lambda i: (i, 0))]
    for arr in packed_flat:
        in_specs.append(pl.BlockSpec(arr.shape, lambda i: (0, 0)))
    out_specs = pl.BlockSpec((tb, out_pad), lambda i: (i, 0))

    # VMEM budget derived from actual buffer sizes: double-buffered weights
    # and x/out tiles plus live f32 intermediates, 2x headroom, capped at the
    # v7x physical VMEM (64 MiB) so an oversized config fails explicitly.
    itemsize = x.dtype.itemsize
    w_bytes = sum(math.prod(a.shape) * a.dtype.itemsize for a in packed_flat)
    widths = [fin0] + [packed_flat[2 * j].shape[1]
                       for j in range(len(packed_flat) // 2)]
    io_bytes = 2 * tb * (fin0 + out_pad) * itemsize
    act_bytes = 2 * tb * max(widths) * 4
    vmem_need = 2 * w_bytes + io_bytes + act_bytes
    vmem_limit = int(max(16 << 20, min(2 * vmem_need, 64 << 20)))

    kernel = functools.partial(_fused_mlp_kernel, activations=activations,
                               compute_dtype=compute_dtype)
    y_p = pl.pallas_call(
        kernel,
        out_shape=jax.ShapeDtypeStruct((b_pad, out_pad), x.dtype),
        grid=(b_pad // tb,),
        in_specs=in_specs,
        out_specs=out_specs,
        compiler_params=pltpu.CompilerParams(
            dimension_semantics=("parallel",),   # megacore sharding on v7x
            vmem_limit_bytes=vmem_limit,
        ),
    )(x_in, *packed_flat)

    # Strip batch + lane padding (no-op slice if nothing was padded).
    if (b_pad != B) or (out_pad != out_dim):
        return y_p[:B, :out_dim]
    return y_p


# ----------------------------------------------------------------------------
# Parameter init (mirrors torch.nn.Linear defaults) and one-time packing.
# ----------------------------------------------------------------------------
def init_densenet_params(key, layers):
    """U(-1/sqrt(in), 1/sqrt(in)) like nn.Linear; weights stored as (in, out)."""
    params = []
    for j in range(len(layers) - 1):
        fan_in, fan_out = layers[j], layers[j + 1]
        key, kw, kb = jax.random.split(key, 3)
        bound = 1.0 / jnp.sqrt(fan_in)
        w = jax.random.uniform(kw, (fan_in, fan_out), jnp.float32, -bound, bound)
        b = jax.random.uniform(kb, (fan_out,), jnp.float32, -bound, bound)
        params.append((w, b))
    return params


def pack_densenet_params(params, compute_dtype=jnp.float32):
    """One-time packing.  Contracting / intermediate feature dims are zero-
    padded only to a multiple of 8 (sublanes); the final output width is
    padded to 128 so the kernel's HBM store is lane-dense.  Zero padding is
    exact.  compute_dtype=jnp.bfloat16 enables the bf16 MXU path (weights cast
    here, f32 accumulation in-kernel); biases stay f32."""
    n = len(params)
    flat = []
    for j, (w, b) in enumerate(params):
        fin, fout = w.shape
        fin_p = _round_up(fin, _SUBLANE)
        fout_p = _round_up(fout, _LANE if j == n - 1 else _SUBLANE)
        wp = jnp.zeros((fin_p, fout_p), compute_dtype).at[:fin, :fout].set(
            w.astype(compute_dtype))
        bp = jnp.zeros((1, fout_p), jnp.float32).at[0, :fout].set(b)
        flat += [wp, bp]
    return tuple(flat)


def densenet_forward(x, packed_params, layers, nonlinearity,
                     out_nonlinearity=None, block_b=1024):
    """Forward pass of DenseNet(layers, nonlinearity, out_nonlinearity)."""
    n_layers = len(layers) - 1
    assert n_layers >= 1
    activations = tuple(
        nonlinearity if j != n_layers - 1 else out_nonlinearity
        for j in range(n_layers)
    )
    return _fused_mlp_call(
        x, packed_params,
        activations=activations, out_dim=layers[-1], block_b=block_b,
    )
    # TODO(synk): normalize=True (BatchNorm1d) branch not implemented; this
    # reproduces the default DenseNet configuration (normalize=False).


# ----------------------------------------------------------------------------
# Pure-JAX reference for correctness check.
# ----------------------------------------------------------------------------
def _ref_forward(x, params, nonlinearity, out_nonlinearity=None):
    n_layers = len(params)
    for j, (w, b) in enumerate(params):
        x = x @ w + b
        x = _apply_act(x, nonlinearity if j != n_layers - 1 else out_nonlinearity)
    return x


if __name__ == "__main__":
    key = jax.random.PRNGKey(0)
    layers = [32, 64, 64, 16]          # DenseNet(layers=[32,64,64,16], 'tanh')
    batch = 8

    kx, kp = jax.random.split(key)
    x = jax.random.normal(kx, (batch, layers[0]), jnp.float32)
    params = init_densenet_params(kp, layers)

    ref = _ref_forward(x, params, "tanh")

    # f32 path: exact parity with the reference.
    packed_f32 = pack_densenet_params(params)            # one-time pad (hoisted)
    out = jax.block_until_ready(densenet_forward(x, packed_f32, layers, "tanh"))
    assert out.shape == (batch, layers[-1])
    assert jnp.allclose(out, ref, atol=1e-5, rtol=1e-5)

    # bf16-matmul path (f32 accumulation): relaxed tolerance.
    packed_bf16 = pack_densenet_params(params, compute_dtype=jnp.bfloat16)
    out_bf16 = jax.block_until_ready(densenet_forward(x, packed_bf16, layers, "tanh"))
    assert out_bf16.shape == (batch, layers[-1])
    assert jnp.allclose(out_bf16, ref, atol=5e-2, rtol=5e-2)

    # Unaligned shapes: exercises the batch/feature padding paths (and swish).
    layers2 = [10, 24, 5]
    k2x, k2p = jax.random.split(kp)
    x2 = jax.random.normal(k2x, (13, layers2[0]), jnp.float32)
    params2 = init_densenet_params(k2p, layers2)
    out2 = jax.block_until_ready(
        densenet_forward(x2, pack_densenet_params(params2), layers2, "swish"))
    ref2 = _ref_forward(x2, params2, "swish")
    assert out2.shape == (13, layers2[-1])
    assert jnp.allclose(out2, ref2, atol=1e-5, rtol=1e-5)

    print("KERNEL_OK")
</pallas_src>

<mosaic_0001>
module attributes {stable_mosaic.version = 11 : i64} {
  func.func @_fused_mlp_kernel(%arg0: i32, %arg1: memref<8x32xf32, #tpu.memory_space<vmem>>, %arg2: memref<32x64xf32, #tpu.memory_space<vmem>>, %arg3: memref<1x64xf32, #tpu.memory_space<vmem>>, %arg4: memref<64x64xf32, #tpu.memory_space<vmem>>, %arg5: memref<1x64xf32, #tpu.memory_space<vmem>>, %arg6: memref<64x128xf32, #tpu.memory_space<vmem>>, %arg7: memref<1x128xf32, #tpu.memory_space<vmem>>, %arg8: memref<8x128xf32, #tpu.memory_space<vmem>>) attributes {dimension_semantics = [#tpu.dimension_semantics<parallel>], iteration_bounds = array<i64: 1>, scalar_prefetch = 0 : i64, scratch_operands = 0 : i64, tpu.core_type = #tpu.core_type<tc>, window_params = [{transform_indices = @transform_0, window_bounds = array<i64: 8, 32>}, {pipeline_mode = #tpu.pipeline_mode<synchronous>, transform_indices = @transform_1, window_bounds = array<i64: 32, 64>}, {pipeline_mode = #tpu.pipeline_mode<synchronous>, transform_indices = @transform_2, window_bounds = array<i64: 1, 64>}, {pipeline_mode = #tpu.pipeline_mode<synchronous>, transform_indices = @transform_3, window_bounds = array<i64: 64, 64>}, {pipeline_mode = #tpu.pipeline_mode<synchronous>, transform_indices = @transform_4, window_bounds = array<i64: 1, 64>}, {pipeline_mode = #tpu.pipeline_mode<synchronous>, transform_indices = @transform_5, window_bounds = array<i64: 64, 128>}, {pipeline_mode = #tpu.pipeline_mode<synchronous>, transform_indices = @transform_6, window_bounds = array<i64: 1, 128>}, {transform_indices = @transform_7, window_bounds = array<i64: 8, 128>}]} {
    %c0 = arith.constant 0 : index
    %c0_0 = arith.constant 0 : index
    %0 = vector.load %arg1[%c0, %c0_0] : memref<8x32xf32, #tpu.memory_space<vmem>>, vector<8x32xf32>
    %c0_1 = arith.constant 0 : index
    %c0_2 = arith.constant 0 : index
    %1 = vector.load %arg2[%c0_1, %c0_2] : memref<32x64xf32, #tpu.memory_space<vmem>>, vector<32x64xf32>
    %c0_3 = arith.constant 0 : index
    %c0_4 = arith.constant 0 : index
    %2 = vector.load %arg3[%c0_3, %c0_4] : memref<1x64xf32, #tpu.memory_space<vmem>>, vector<1x64xf32>
    %cst = arith.constant dense<0.000000e+00> : vector<8x64xf32>
    %3 = tpu.matmul %0, %1, %cst {dimension_numbers = #tpu.dot_dimension_numbers<[1], [0], [0], [1], [0, 0, 1, 1], [], []>} : vector<8x32xf32>, vector<32x64xf32>, vector<8x64xf32> -> vector<8x64xf32>
    %4 = vector.broadcast %2 : vector<1x64xf32> to vector<8x64xf32>
    %5 = arith.addf %3, %4 : vector<8x64xf32>
    %6 = math.tanh %5 : vector<8x64xf32>
    %c0_5 = arith.constant 0 : index
    %c0_6 = arith.constant 0 : index
    %7 = vector.load %arg4[%c0_5, %c0_6] : memref<64x64xf32, #tpu.memory_space<vmem>>, vector<64x64xf32>
    %c0_7 = arith.constant 0 : index
    %c0_8 = arith.constant 0 : index
    %8 = vector.load %arg5[%c0_7, %c0_8] : memref<1x64xf32, #tpu.memory_space<vmem>>, vector<1x64xf32>
    %cst_9 = arith.constant dense<0.000000e+00> : vector<8x64xf32>
    %9 = tpu.matmul %6, %7, %cst_9 {dimension_numbers = #tpu.dot_dimension_numbers<[1], [0], [0], [1], [0, 0, 1, 1], [], []>} : vector<8x64xf32>, vector<64x64xf32>, vector<8x64xf32> -> vector<8x64xf32>
    %10 = vector.broadcast %8 : vector<1x64xf32> to vector<8x64xf32>
    %11 = arith.addf %9, %10 : vector<8x64xf32>
    %12 = math.tanh %11 : vector<8x64xf32>
    %c0_10 = arith.constant 0 : index
    %c0_11 = arith.constant 0 : index
    %13 = vector.load %arg6[%c0_10, %c0_11] : memref<64x128xf32, #tpu.memory_space<vmem>>, vector<64x128xf32>
    %c0_12 = arith.constant 0 : index
    %c0_13 = arith.constant 0 : index
    %14 = vector.load %arg7[%c0_12, %c0_13] : memref<1x128xf32, #tpu.memory_space<vmem>>, vector<1x128xf32>
    %cst_14 = arith.constant dense<0.000000e+00> : vector<8x128xf32>
    %15 = tpu.matmul %12, %13, %cst_14 {dimension_numbers = #tpu.dot_dimension_numbers<[1], [0], [0], [1], [0, 0, 1, 1], [], []>} : vector<8x64xf32>, vector<64x128xf32>, vector<8x128xf32> -> vector<8x128xf32>
    %16 = vector.broadcast %14 : vector<1x128xf32> to vector<8x128xf32>
    %17 = arith.addf %15, %16 : vector<8x128xf32>
    %c0_15 = arith.constant 0 : index
    %c0_16 = arith.constant 0 : index
    %18 = vector.load %arg8[%c0_15, %c0_16] : memref<8x128xf32, #tpu.memory_space<vmem>>, vector<8x128xf32>
    tpu.vector_store %arg8[%c0_15, %c0_16], %17 {strides = array<i32>} : memref<8x128xf32, #tpu.memory_space<vmem>>, vector<8x128xf32>,
    return
  }
  func.func @transform_0(%arg0: i32) -> (i32, i32) {
    %c0_i32 = arith.constant 0 : i32
    %c0_i32_0 = arith.constant 0 : i32
    return %arg0, %c0_i32 : i32, i32
  }
  func.func @transform_1(%arg0: i32) -> (i32, i32) {
    %c0_i32 = arith.constant 0 : i32
    %c0_i32_0 = arith.constant 0 : i32
    %c0_i32_1 = arith.constant 0 : i32
    return %c0_i32, %c0_i32_0 : i32, i32
  }
  func.func @transform_2(%arg0: i32) -> (i32, i32) {
    %c0_i32 = arith.constant 0 : i32
    %c0_i32_0 = arith.constant 0 : i32
    %c0_i32_1 = arith.constant 0 : i32
    return %c0_i32, %c0_i32_0 : i32, i32
  }
  func.func @transform_3(%arg0: i32) -> (i32, i32) {
    %c0_i32 = arith.constant 0 : i32
    %c0_i32_0 = arith.constant 0 : i32
    %c0_i32_1 = arith.constant 0 : i32
    return %c0_i32, %c0_i32_0 : i32, i32
  }
  func.func @transform_4(%arg0: i32) -> (i32, i32) {
    %c0_i32 = arith.constant 0 : i32
    %c0_i32_0 = arith.constant 0 : i32
    %c0_i32_1 = arith.constant 0 : i32
    return %c0_i32, %c0_i32_0 : i32, i32
  }
  func.func @transform_5(%arg0: i32) -> (i32, i32) {
    %c0_i32 = arith.constant 0 : i32
    %c0_i32_0 = arith.constant 0 : i32
    %c0_i32_1 = arith.constant 0 : i32
    return %c0_i32, %c0_i32_0 : i32, i32
  }
  func.func @transform_6(%arg0: i32) -> (i32, i32) {
    %c0_i32 = arith.constant 0 : i32
    %c0_i32_0 = arith.constant 0 : i32
    %c0_i32_1 = arith.constant 0 : i32
    return %c0_i32, %c0_i32_0 : i32, i32
  }
  func.func @transform_7(%arg0: i32) -> (i32, i32) {
    %c0_i32 = arith.constant 0 : i32
    %c0_i32_0 = arith.constant 0 : i32
    return %arg0, %c0_i32 : i32, i32
  }
}

</mosaic_0001>

<llo_original>
// kernel: _fused_mlp_call.1
$region0: #{_fused_mlp_call.1}
  #allocation0 [shape = 'u32[]', space=smem, size = 0x4, offset = 0x4, fixed_abs, tag = 'smem constant byte address 0x4 - core index']
  #allocation1 [shape = 'u32[144,128]{1,0:T(1,128)}', space=vmem, size = 0x12000, scoped, tag = 'internal scratch']
  %s0 = inlined_call_operand.hbm [shape: f32[8,32], index: 0, kind: input, shape index: {}]
  %s1 = inlined_call_operand.hbm [shape: f32[32,64], index: 1, kind: input, shape index: {}]
  %s2 = inlined_call_operand.vmem [shape: f32[1,64], index: 2, kind: input, shape index: {}]
  %s3 = inlined_call_operand.hbm [shape: f32[64,64], index: 3, kind: input, shape index: {}]
  %s4 = inlined_call_operand.vmem [shape: f32[1,64], index: 4, kind: input, shape index: {}]
  %s5 = inlined_call_operand.hbm [shape: f32[64,128], index: 5, kind: input, shape index: {}]
  %s6 = inlined_call_operand.vmem [shape: f32[1,128], index: 6, kind: input, shape index: {}]
  %s7 = inlined_call_operand.hbm [shape: f32[8,128], index: 7, kind: output, shape index: {}]
  %s8 = sld [smem:[#allocation0]]
  $region54: #{_fused_mlp_call.1} parent=0
    _
  %s10 = ssub.s32 1, %s8
  %s11 = scalar_select 0, %s10, %s8
  $region1: #{_fused_mlp_call.1} parent=0
    #allocation2 [shape = 'u8[4096]{0}', space=vmem, size = 0x1000, scoped, tag = 'input window, operand 0, single buffered']
    #allocation3 [shape = 's32[1]{0}', space=sflag, size = 0x4, scoped, tag = 'scoped memory for _fused_mlp_call.1']
    #allocation4 [shape = 's32[1]{0}', space=sflag, size = 0x4, scoped, tag = 'scoped memory for _fused_mlp_call.1']
    #allocation5 [shape = 'u8[16384]{0}', space=vmem, size = 0x4000, scoped, tag = 'input window, operand 1, single buffered']
    #allocation6 [shape = 's32[1]{0}', space=sflag, size = 0x4, scoped, tag = 'scoped memory for _fused_mlp_call.1']
    #allocation7 [shape = 'u8[32768]{0}', space=vmem, size = 0x8000, scoped, tag = 'input window, operand 3, single buffered']
    #allocation8 [shape = 'u8[32768]{0}', space=vmem, size = 0x8000, scoped, tag = 'input window, operand 5, single buffered']
    #allocation9 [shape = 's32[1]{0}', space=sflag, size = 0x4, scoped, tag = 'scoped memory for _fused_mlp_call.1']
    #allocation10 [shape = 'u8[4096]{0}', space=vmem, size = 0x1000, scoped, tag = 'output window, operand 0, single buffered']
    %12 = vsyncpa [#allocation3], 0
    %13 = vsyncpa [#allocation6], 0
    %14 = vsyncpa [#allocation9], 0
    %15 = vsyncpa [#allocation4], 0
    // Predicated region
    $region2: #{_fused_mlp_call.1} parent=1 // pred_check
      _
    $region3: #{_fused_mlp_call.1} parent=1 // pred_check_branch
      %17 = sbr.rel (0) target = $region5
    $region4: #{_fused_mlp_call.1} parent=1 // pred_region
      %s19 = ssub.s32 128, 128
      %20 = vsyncadd [#allocation3], %s19
      %s22 = sshll.u32 [#allocation2], 4
      %s23 = int_to_ptr.vmem [resolvable:$true] %s22
      %25 = dma.hbm_to_vmem [thread:$0]  %s0, 128, %s23, [#allocation3]
    $region5: #{_fused_mlp_call.1} parent=1 // pred_fallthru
      _
    // Predicated region
    $region6: #{_fused_mlp_call.1} parent=1 // pred_check
      _
    $region7: #{_fused_mlp_call.1} parent=1 // pred_check_branch
      %27 = sbr.rel (0) target = $region9
    $region8: #{_fused_mlp_call.1} parent=1 // pred_region
      %s29 = ssub.s32 512, 512
      %30 = vsyncadd [#allocation6], %s29
      %s31 = sshll.u32 [#allocation5], 4
      %s32 = int_to_ptr.vmem [resolvable:$true] %s31
      %37 = dma.hbm_to_vmem [thread:$0]  %s1, 512, %s32, [#allocation6], 128, 128, 8
    $region9: #{_fused_mlp_call.1} parent=1 // pred_fallthru
      _
    // Predicated region
    $region10: #{_fused_mlp_call.1} parent=1 // pred_check
      _
    $region11: #{_fused_mlp_call.1} parent=1 // pred_check_branch
      %39 = sbr.rel (0) target = $region13
    $region12: #{_fused_mlp_call.1} parent=1 // pred_region
      _
    $region13: #{_fused_mlp_call.1} parent=1 // pred_fallthru
      _
    // Predicated region
    $region14: #{_fused_mlp_call.1} parent=1 // pred_check
      _
    $region15: #{_fused_mlp_call.1} parent=1 // pred_check_branch
      %41 = sbr.rel (0) target = $region17
    $region16: #{_fused_mlp_call.1} parent=1 // pred_region
      %s43 = ssub.s32 1024, 1024
      %44 = vsyncadd [#allocation6], %s43
      %s45 = sshll.u32 [#allocation7], 4
      %s46 = int_to_ptr.vmem [resolvable:$true] %s45
      %51 = dma.hbm_to_vmem [thread:$0]  %s3, 1024, %s46, [#allocation6], 128, 128, 8
    $region17: #{_fused_mlp_call.1} parent=1 // pred_fallthru
      _
    // Predicated region
    $region18: #{_fused_mlp_call.1} parent=1 // pred_check
      _
    $region19: #{_fused_mlp_call.1} parent=1 // pred_check_branch
      %53 = sbr.rel (0) target = $region21
    $region20: #{_fused_mlp_call.1} parent=1 // pred_region
      _
    $region21: #{_fused_mlp_call.1} parent=1 // pred_fallthru
      _
    // Predicated region
    $region22: #{_fused_mlp_call.1} parent=1 // pred_check
      _
    $region23: #{_fused_mlp_call.1} parent=1 // pred_check_branch
      %55 = sbr.rel (0) target = $region25
    $region24: #{_fused_mlp_call.1} parent=1 // pred_region
      %s57 = ssub.s32 1024, 1024
      %58 = vsyncadd [#allocation9], %s57
      %s59 = sshll.u32 [#allocation8], 4
      %s60 = int_to_ptr.vmem [resolvable:$true] %s59
      %65 = dma.hbm_to_vmem [thread:$0]  %s5, 1024, %s60, [#allocation9], 128, 128, 8
    $region25: #{_fused_mlp_call.1} parent=1 // pred_fallthru
      _
    // Predicated region
    $region26: #{_fused_mlp_call.1} parent=1 // pred_check
      _
    $region27: #{_fused_mlp_call.1} parent=1 // pred_check_branch
      %67 = sbr.rel (0) target = $region29
    $region28: #{_fused_mlp_call.1} parent=1 // pred_region
      _
    $region29: #{_fused_mlp_call.1} parent=1 // pred_fallthru
      _
    // Predicated region
    $region30: #{_fused_mlp_call.1} parent=1 // pred_check
      _
    $region31: #{_fused_mlp_call.1} parent=1 // pred_check_branch
      %69 = sbr.rel (0) target = $region33
    $region32: #{_fused_mlp_call.1} parent=1 // pred_region
      %70 = dma.done [#allocation3], 128
    $region33: #{_fused_mlp_call.1} parent=1 // pred_fallthru
      _
    // Predicated region
    $region34: #{_fused_mlp_call.1} parent=1 // pred_check
      _
    $region35: #{_fused_mlp_call.1} parent=1 // pred_check_branch
      %72 = sbr.rel (0) target = $region37
    $region36: #{_fused_mlp_call.1} parent=1 // pred_region
      %73 = dma.done [#allocation6], 512
    $region37: #{_fused_mlp_call.1} parent=1 // pred_fallthru
      _
    // Predicated region
    $region38: #{_fused_mlp_call.1} parent=1 // pred_check
      _
    $region39: #{_fused_mlp_call.1} parent=1 // pred_check_branch
      %75 = sbr.rel (0) target = $region41
    $region40: #{_fused_mlp_call.1} parent=1 // pred_region
      %76 = dma.done [#allocation6], 1024
    $region41: #{_fused_mlp_call.1} parent=1 // pred_fallthru
      _
    // Predicated region
    $region42: #{_fused_mlp_call.1} parent=1 // pred_check
      _
    $region43: #{_fused_mlp_call.1} parent=1 // pred_check_branch
      %78 = sbr.rel (0) target = $region45
    $region44: #{_fused_mlp_call.1} parent=1 // pred_region
      %79 = dma.done [#allocation9], 1024
    $region45: #{_fused_mlp_call.1} parent=1 // pred_fallthru
      _
    %v80 = vld [vmem:[#allocation2] sm:$0xff]
    %v81 = vld [vmem:[#allocation5] sm:$0xff]
    %v82 = vld [vmem:[#allocation5 + $0x8] sm:$0xff]
    %v83 = vld [vmem:[#allocation5 + $0x10] sm:$0xff]
    %v84 = vld [vmem:[#allocation5 + $0x18] sm:$0xff]
    %v85 = vld [vmem:[%s2] sm:$0x1]
    %v87 = vlaneseq
    %v88 = vshrl.u32 %v87, 7
    %v89 = vsub.s32 0, %v88
    %v90 = vrot.slane %v85, %v89
    %vm92 = vcmask 261120
    %v94 = vsel %vm92, %v80, 0
    %96 = vmatprep.subr.mxu0 0.0
    %97 = vmatpush1.msra.mxu0 0.0
    %98 = vmatprep.subr.mxu0 0.0
    %99 = vmatpush1.msra.mxu0 0.0
    %100 = vmatprep.subr.mxu0 0.0
    %101 = vmatpush1.msra.mxu0 0.0
    %102 = vmatprep.subr.mxu0 0.0
    %103 = vmatpush1.msra.mxu0 0.0
    %104 = vmatprep.subr.mxu0 0.0
    %105 = vmatpush1.msra.mxu0 0.0
    %106 = vmatprep.subr.mxu0 0.0
    %107 = vmatpush1.msra.mxu0 0.0
    %108 = vmatprep.subr.mxu0 0.0
    %109 = vmatpush1.msra.mxu0 0.0
    %110 = vmatprep.subr.mxu0 0.0
    %111 = vmatpush1.msra.mxu0 0.0
    %112 = vmatprep.subr.mxu0 0.0
    %113 = vmatpush1.msra.mxu0 0.0
    %114 = vmatprep.subr.mxu0 0.0
    %115 = vmatpush1.msra.mxu0 0.0
    %116 = vmatprep.subr.mxu0 0.0
    %117 = vmatpush1.msra.mxu0 0.0
    %118 = vmatprep.subr.mxu0 0.0
    %119 = vmatpush1.msra.mxu0 0.0
    %120 = vmatprep.subr.mxu0 0.0
    %121 = vmatpush1.msra.mxu0 %v84
    %122 = vmatprep.subr.mxu0 0.0
    %123 = vmatpush1.msra.mxu0 %v83
    %124 = vmatprep.subr.mxu0 0.0
    %125 = vmatpush1.msra.mxu0 %v82
    %126 = vmatprep.subr.mxu0 0.0
    %127 = vmatpush1.msra.mxu0 %v81
    %128 = vmatprep.subr.mxu0 0.0
    %129 = vmatpush2.msra.mxu0 0.0
    %130 = vmatprep.subr.mxu0 0.0
    %131 = vmatpush2.msra.mxu0 0.0
    %132 = vmatprep.subr.mxu0 0.0
    %133 = vmatpush2.msra.mxu0 0.0
    %134 = vmatprep.subr.mxu0 0.0
    %135 = vmatpush2.msra.mxu0 0.0
    %136 = vmatprep.subr.mxu0 0.0
    %137 = vmatpush2.msra.mxu0 0.0
    %138 = vmatprep.subr.mxu0 0.0
    %139 = vmatpush2.msra.mxu0 0.0
    %140 = vmatprep.subr.mxu0 0.0
    %141 = vmatpush2.msra.mxu0 0.0
    %142 = vmatprep.subr.mxu0 0.0
    %143 = vmatpush2.msra.mxu0 0.0
    %144 = vmatprep.subr.mxu0 0.0
    %145 = vmatpush2.msra.mxu0 0.0
    %146 = vmatprep.subr.mxu0 0.0
    %147 = vmatpush2.msra.mxu0 0.0
    %148 = vmatprep.subr.mxu0 0.0
    %149 = vmatpush2.msra.mxu0 0.0
    %150 = vmatprep.subr.mxu0 0.0
    %151 = vmatpush2.msra.mxu0 0.0
    %152 = vmatprep.subr.mxu0 0.0
    %153 = vmatpush2.msra.mxu0 0.0
    %154 = vmatprep.subr.mxu0 0.0
    %155 = vmatpush2.msra.mxu0 0.0
    %156 = vmatprep.subr.mxu0 0.0
    %157 = vmatpush2.msra.mxu0 0.0
    %158 = vmatprep.subr.mxu0 0.0
    %159 = vmatpush2.msra.mxu0 0.0
    %160 = vmatprep.mubr.f32.mxu0 0.0
    %161 = vmatmul.mubr.f32.gmra.mxu0 %v94
    %v162 = vpop.f32.mrf.mxu0
    %v163 = vadd.f32 %v90, %v162
    %v164 = vpop.f32.mrf.mxu0
    %165 = vdwg.mxu0
    %v166 = vtanh.pop %v163
    %v167 = vld [vmem:[#allocation7] sm:$0xff]
    %v168 = vld [vmem:[#allocation7 + $0x8] sm:$0xff]
    %v169 = vld [vmem:[#allocation7 + $0x10] sm:$0xff]
    %v170 = vld [vmem:[#allocation7 + $0x18] sm:$0xff]
    %v171 = vld [vmem:[#allocation7 + $0x20] sm:$0xff]
    %v172 = vld [vmem:[#allocation7 + $0x28] sm:$0xff]
    %v173 = vld [vmem:[#allocation7 + $0x30] sm:$0xff]
    %v174 = vld [vmem:[#allocation7 + $0x38] sm:$0xff]
    %v175 = vld [vmem:[%s4] sm:$0x1]
    %v177 = vlaneseq
    %v178 = vshrl.u32 %v177, 7
    %v179 = vsub.s32 0, %v178
    %v180 = vrot.slane %v175, %v179
    %vm182 = vcmask 523264
    %v184 = vsel %vm182, %v166, 0
    %186 = vmatprep.subr.mxu0 0.0
    %187 = vmatpush1.msra.mxu0 0.0
    %188 = vmatprep.subr.mxu0 0.0
    %189 = vmatpush1.msra.mxu0 0.0
    %190 = vmatprep.subr.mxu0 0.0
    %191 = vmatpush1.msra.mxu0 0.0
    %192 = vmatprep.subr.mxu0 0.0
    %193 = vmatpush1.msra.mxu0 0.0
    %194 = vmatprep.subr.mxu0 0.0
    %195 = vmatpush1.msra.mxu0 0.0
    %196 = vmatprep.subr.mxu0 0.0
    %197 = vmatpush1.msra.mxu0 0.0
    %198 = vmatprep.subr.mxu0 0.0
    %199 = vmatpush1.msra.mxu0 0.0
    %200 = vmatprep.subr.mxu0 0.0
    %201 = vmatpush1.msra.mxu0 0.0
    %202 = vmatprep.subr.mxu0 0.0
    %203 = vmatpush1.msra.mxu0 %v174
    %204 = vmatprep.subr.mxu0 0.0
    %205 = vmatpush1.msra.mxu0 %v173
    %206 = vmatprep.subr.mxu0 0.0
    %207 = vmatpush1.msra.mxu0 %v172
    %208 = vmatprep.subr.mxu0 0.0
    %209 = vmatpush1.msra.mxu0 %v171
    %210 = vmatprep.subr.mxu0 0.0
    %211 = vmatpush1.msra.mxu0 %v170
    %212 = vmatprep.subr.mxu0 0.0
    %213 = vmatpush1.msra.mxu0 %v169
    %214 = vmatprep.subr.mxu0 0.0
    %215 = vmatpush1.msra.mxu0 %v168
    %216 = vmatprep.subr.mxu0 0.0
    %217 = vmatpush1.msra.mxu0 %v167
    %218 = vmatprep.subr.mxu0 0.0
    %219 = vmatpush2.msra.mxu0 0.0
    %220 = vmatprep.subr.mxu0 0.0
    %221 = vmatpush2.msra.mxu0 0.0
    %222 = vmatprep.subr.mxu0 0.0
    %223 = vmatpush2.msra.mxu0 0.0
    %224 = vmatprep.subr.mxu0 0.0
    %225 = vmatpush2.msra.mxu0 0.0
    %226 = vmatprep.subr.mxu0 0.0
    %227 = vmatpush2.msra.mxu0 0.0
    %228 = vmatprep.subr.mxu0 0.0
    %229 = vmatpush2.msra.mxu0 0.0
    %230 = vmatprep.subr.mxu0 0.0
    %231 = vmatpush2.msra.mxu0 0.0
    %232 = vmatprep.subr.mxu0 0.0
    %233 = vmatpush2.msra.mxu0 0.0
    %234 = vmatprep.subr.mxu0 0.0
    %235 = vmatpush2.msra.mxu0 0.0
    %236 = vmatprep.subr.mxu0 0.0
    %237 = vmatpush2.msra.mxu0 0.0
    %238 = vmatprep.subr.mxu0 0.0
    %239 = vmatpush2.msra.mxu0 0.0
    %240 = vmatprep.subr.mxu0 0.0
    %241 = vmatpush2.msra.mxu0 0.0
    %242 = vmatprep.subr.mxu0 0.0
    %243 = vmatpush2.msra.mxu0 0.0
    %244 = vmatprep.subr.mxu0 0.0
    %245 = vmatpush2.msra.mxu0 0.0
    %246 = vmatprep.subr.mxu0 0.0
    %247 = vmatpush2.msra.mxu0 0.0
    %248 = vmatprep.subr.mxu0 0.0
    %249 = vmatpush2.msra.mxu0 0.0
    %250 = vmatprep.mubr.f32.mxu0 0.0
    %251 = vmatmul.mubr.f32.gmra.mxu0 %v184
    %v252 = vpop.f32.mrf.mxu0
    %v253 = vadd.f32 %v180, %v252
    %v254 = vpop.f32.mrf.mxu0
    %255 = vdwg.mxu0
    %v256 = vtanh.pop %v253
    %v257 = vld [vmem:[#allocation8] sm:$0xff]
    %v258 = vld [vmem:[#allocation8 + $0x8] sm:$0xff]
    %v259 = vld [vmem:[#allocation8 + $0x10] sm:$0xff]
    %v260 = vld [vmem:[#allocation8 + $0x18] sm:$0xff]
    %v261 = vld [vmem:[#allocation8 + $0x20] sm:$0xff]
    %v262 = vld [vmem:[#allocation8 + $0x28] sm:$0xff]
    %v263 = vld [vmem:[#allocation8 + $0x30] sm:$0xff]
    %v264 = vld [vmem:[#allocation8 + $0x38] sm:$0xff]
    %v265 = vld [vmem:[%s6] sm:$0x1]
    %v267 = vlaneseq
    %v268 = vshrl.u32 %v267, 7
    %v269 = vsub.s32 0, %v268
    %v270 = vrot.slane %v265, %v269
    %v273 = vsel %vm182, %v256, 0
    %275 = vmatprep.subr.mxu0 0.0
    %276 = vmatpush1.msra.mxu0 0.0
    %277 = vmatprep.subr.mxu0 0.0
    %278 = vmatpush1.msra.mxu0 0.0
    %279 = vmatprep.subr.mxu0 0.0
    %280 = vmatpush1.msra.mxu0 0.0
    %281 = vmatprep.subr.mxu0 0.0
    %282 = vmatpush1.msra.mxu0 0.0
    %283 = vmatprep.subr.mxu0 0.0
    %284 = vmatpush1.msra.mxu0 0.0
    %285 = vmatprep.subr.mxu0 0.0
    %286 = vmatpush1.msra.mxu0 0.0
    %287 = vmatprep.subr.mxu0 0.0
    %288 = vmatpush1.msra.mxu0 0.0
    %289 = vmatprep.subr.mxu0 0.0
    %290 = vmatpush1.msra.mxu0 0.0
    %291 = vmatprep.subr.mxu0 0.0
    %292 = vmatpush1.msra.mxu0 %v264
    %293 = vmatprep.subr.mxu0 0.0
    %294 = vmatpush1.msra.mxu0 %v263
    %295 = vmatprep.subr.mxu0 0.0
    %296 = vmatpush1.msra.mxu0 %v262
    %297 = vmatprep.subr.mxu0 0.0
    %298 = vmatpush1.msra.mxu0 %v261
    %299 = vmatprep.subr.mxu0 0.0
    %300 = vmatpush1.msra.mxu0 %v260
    %301 = vmatprep.subr.mxu0 0.0
    %302 = vmatpush1.msra.mxu0 %v259
    %303 = vmatprep.subr.mxu0 0.0
    %304 = vmatpush1.msra.mxu0 %v258
    %305 = vmatprep.subr.mxu0 0.0
    %306 = vmatpush1.msra.mxu0 %v257
    %307 = vmatprep.subr.mxu0 0.0
    %308 = vmatpush2.msra.mxu0 0.0
    %309 = vmatprep.subr.mxu0 0.0
    %310 = vmatpush2.msra.mxu0 0.0
    %311 = vmatprep.subr.mxu0 0.0
    %312 = vmatpush2.msra.mxu0 0.0
    %313 = vmatprep.subr.mxu0 0.0
    %314 = vmatpush2.msra.mxu0 0.0
    %315 = vmatprep.subr.mxu0 0.0
    %316 = vmatpush2.msra.mxu0 0.0
    %317 = vmatprep.subr.mxu0 0.0
    %318 = vmatpush2.msra.mxu0 0.0
    %319 = vmatprep.subr.mxu0 0.0
    %320 = vmatpush2.msra.mxu0 0.0
    %321 = vmatprep.subr.mxu0 0.0
    %322 = vmatpush2.msra.mxu0 0.0
    %323 = vmatprep.subr.mxu0 0.0
    %324 = vmatpush2.msra.mxu0 0.0
    %325 = vmatprep.subr.mxu0 0.0
    %326 = vmatpush2.msra.mxu0 0.0
    %327 = vmatprep.subr.mxu0 0.0
    %328 = vmatpush2.msra.mxu0 0.0
    %329 = vmatprep.subr.mxu0 0.0
    %330 = vmatpush2.msra.mxu0 0.0
    %331 = vmatprep.subr.mxu0 0.0
    %332 = vmatpush2.msra.mxu0 0.0
    %333 = vmatprep.subr.mxu0 0.0
    %334 = vmatpush2.msra.mxu0 0.0
    %335 = vmatprep.subr.mxu0 0.0
    %336 = vmatpush2.msra.mxu0 0.0
    %337 = vmatprep.subr.mxu0 0.0
    %338 = vmatpush2.msra.mxu0 0.0
    %339 = vmatprep.mubr.f32.mxu0 0.0
    %340 = vmatmul.mubr.f32.gmra.mxu0 %v273
    %v341 = vpop.f32.mrf.mxu0
    %v342 = vadd.f32 %v270, %v341
    %v343 = vpop.f32.mrf.mxu0
    %344 = vdwg.mxu0
    %345 = vst [vmem:[#allocation10] sm:$0xff] %v342
    // Predicated region
    $region46: #{_fused_mlp_call.1} parent=1 // pred_check
      _
    $region47: #{_fused_mlp_call.1} parent=1 // pred_check_branch
      %347 = sbr.rel (0) target = $region49
    $region48: #{_fused_mlp_call.1} parent=1 // pred_region
      %s349 = ssub.s32 128, 128
      %350 = vsyncadd [#allocation4], %s349
      %s352 = sshll.u32 [#allocation10], 4
      %s353 = int_to_ptr.vmem [resolvable:$true] %s352
      %355 = dma.vmem_to_hbm [thread:$0]  %s353, 128, %s7, [#allocation4]
    $region49: #{_fused_mlp_call.1} parent=1 // pred_fallthru
      _
    // Predicated region
    $region50: #{_fused_mlp_call.1} parent=1 // pred_check
      _
    $region51: #{_fused_mlp_call.1} parent=1 // pred_check_branch
      %357 = sbr.rel (0) target = $region53
    $region52: #{_fused_mlp_call.1} parent=1 // pred_region
      %358 = dma.done [#allocation4], 128
    $region53: #{_fused_mlp_call.1} parent=1 // pred_fallthru
      _
    %359 = vsyncpa [#allocation3], 1
    %360 = vsyncpa [#allocation6], 1
    %361 = vsyncpa [#allocation9], 1
    %362 = vsyncpa [#allocation4], 1

</llo_original>
